<compile_context>
chip_gen: v7x
topology: tpu7x:2x2x1
jax: 0.10.0
libtpu: 0.0.40
codegen_flags: <defaults>
</compile_context>

<pallas_src>
import functools

import jax
import jax.numpy as jnp
from jax.experimental import pallas as pl
from jax.experimental.pallas import tpu as pltpu

OBS_DIM = 24
ACT_DIM = 10
IN_DIM = OBS_DIM + 2 * ACT_DIM    # 44
HIDDEN = 64
OUT_DIM = 24
NEG_SLOPE = 0.01                  # PyTorch F.leaky_relu default
MAX_TB = 4096                     # default batch tile (rows); sweepable 2K-8K
SUBLANE = 16                      # bf16 sublane packing -> keep row counts %16


def _round_up(x, m):
    return (x + m - 1) // m * m


def _dimension_semantics():
    """Batch axis semantics: CORE_PARALLEL on v7x (2 TCs/chip) so both TensorCores
    split the grid; elsewhere plain 'parallel' (megacore / no-op on single-TC)."""
    try:
        kind = jax.devices()[0].device_kind.lower()
        if "v7" in kind or "7x" in kind:
            return (pltpu.CORE_PARALLEL,)
    except Exception:
        pass
    return ("parallel",)


# --------------------------------------------------------------------------- kernel
def predictor_kernel(x_ref, w12_ref, b12_ref, w3_ref, b3_ref, o_ref):
    """One batch tile of the folded MLP: 2 MXU dots + leaky_relu, f32 math."""
    x = x_ref[...].astype(jnp.float32)                               # bf16 I/O -> f32
    h = jnp.dot(x, w12_ref[...], preferred_element_type=jnp.float32) + b12_ref[...]
    h = jnp.where(h > 0, h, NEG_SLOPE * h)                           # leaky_relu (f32)
    o_ref[...] = (jnp.dot(h, w3_ref[...], preferred_element_type=jnp.float32)
                  + b3_ref[...]).astype(o_ref.dtype)                 # (TB, 24) f32


# ------------------------------------------------------------------- param plumbing
def fold_params(params):
    """Fold first_layer into the hidden layer (first_layer has no activation).
    Everything stays f32: weights are a few KB and VMEM-resident, so f32 costs
    nothing in this activation-HBM-bound kernel."""
    w1, b1, w2, b2, w3, b3 = params          # f32, stored (in, out) / (1, out)
    w12 = w1 @ w2                            # (44, H)
    b12 = b1 @ w2 + b2                       # (1, H)
    return w12, b12, w3, b3


# -------------------------------------------------------------------------- wrapper
def predictor_forward_pallas(observation, action_j1, action_j2, params,
                             *, block_rows=None):
    B = observation.shape[0]
    w12, b12, w3, b3 = fold_params(params)

    # One fused prep pass (XLA fuses slice + concat + cast + pad): (Bp, 44) bf16.
    x = jnp.concatenate(
        [observation[:, :OBS_DIM], action_j1, action_j2], axis=1).astype(jnp.bfloat16)
    Bp = _round_up(B, SUBLANE)
    if Bp != B:
        x = jnp.pad(x, ((0, Bp - B), (0, 0)))

    tb_cap = MAX_TB if block_rows is None else block_rows
    assert tb_cap % SUBLANE == 0, "block_rows must be a multiple of 16 (bf16 sublanes)"
    TB = min(tb_cap, Bp)

    # Grid over the batch only; the last tile may be partial -> Pallas masks the
    # out-of-bounds reads/writes, so no padding proportional to TB.
    grid = (pl.cdiv(Bp, TB),)

    resident = lambda a: pl.BlockSpec(a.shape, lambda i: (0, 0))   # DMA'd once, VMEM-resident

    out = pl.pallas_call(
        predictor_kernel,
        out_shape=jax.ShapeDtypeStruct((Bp, OUT_DIM), jnp.float32),
        grid=grid,
        in_specs=[pl.BlockSpec((TB, IN_DIM), lambda i: (i, 0)),
                  resident(w12), resident(b12), resident(w3), resident(b3)],
        out_specs=pl.BlockSpec((TB, OUT_DIM), lambda i: (i, 0)),
        compiler_params=pltpu.CompilerParams(
            dimension_semantics=_dimension_semantics(),
            vmem_limit_bytes=32 * 1024 * 1024),   # explicit for v5e; fine on v6e/v7x
    )(x, w12, b12, w3, b3)

    return out if Bp == B else out[:B]


def predictor_forward(observation, action_j1, action_j2, params,
                      *, min_pallas_batch=2048):
    """Batch-size dispatch: below a few thousand rows the fused-XLA path beats any
    kernel launch for this 44->64->64->24 MLP."""
    if observation.shape[0] < min_pallas_batch:
        return reference_forward(observation, action_j1, action_j2, params)
    return predictor_forward_pallas(observation, action_j1, action_j2, params)


# ------------------------------------------------------------------ init / reference
def init_params(key, hidden_dimension=HIDDEN):
    """PyTorch-Linear-style init U(-1/sqrt(fan_in), 1/sqrt(fan_in)).
    Weights stored (in, out); biases (1, out)."""
    def linear(k, fan_in, fan_out):
        kw, kb = jax.random.split(k)
        bound = 1.0 / jnp.sqrt(fan_in)
        w = jax.random.uniform(kw, (fan_in, fan_out), jnp.float32, -bound, bound)
        b = jax.random.uniform(kb, (1, fan_out), jnp.float32, -bound, bound)
        return w, b

    k1, k2, k3 = jax.random.split(key, 3)
    w1, b1 = linear(k1, IN_DIM, hidden_dimension)
    w2, b2 = linear(k2, hidden_dimension, hidden_dimension)
    w3, b3 = linear(k3, hidden_dimension, OUT_DIM)
    return (w1, b1, w2, b2, w3, b3)


def reference_forward(observation, action_j1, action_j2, params):
    """Pure-JAX f32 reference with the original (unfolded) semantics."""
    w1, b1, w2, b2, w3, b3 = params
    x = jnp.concatenate([observation[:, :OBS_DIM], action_j1, action_j2], axis=1)
    x = x @ w1 + b1
    x = x @ w2 + b2
    x = jnp.where(x > 0, x, NEG_SLOPE * x)
    return x @ w3 + b3


# ------------------------------------------------------------------------------ main
if __name__ == "__main__":
    key = jax.random.PRNGKey(0)
    k_obs, k_a1, k_a2, k_par, k_obs2, k_a12, k_a22 = jax.random.split(key, 7)
    params = init_params(k_par)

    # --- test 1: small batch, B not a multiple of 8, observation has 4 extra
    #             trailing features (exercises the [:, :24] slice + row padding)
    B = 13
    observation = jax.random.normal(k_obs, (B, OBS_DIM + 4), jnp.float32)
    action_j1 = jax.random.normal(k_a1, (B, ACT_DIM), jnp.float32)
    action_j2 = jax.random.normal(k_a2, (B, ACT_DIM), jnp.float32)

    run = jax.jit(predictor_forward_pallas)
    out = jax.block_until_ready(run(observation, action_j1, action_j2, params))
    ref = reference_forward(observation, action_j1, action_j2, params)
    assert out.shape == (B, OUT_DIM)
    # bf16 activation I/O (weights stay f32) -> modest tolerance vs f32 reference
    assert jnp.allclose(out, ref, atol=2e-2, rtol=2e-2), (
        f"test1 mismatch: max abs diff = {float(jnp.max(jnp.abs(out - ref)))}")

    # --- test 2: multi-tile grid with a partial last tile (small block_rows so the
    #             shapes stay tiny while still exercising the cdiv/masked-tile path)
    B2 = 200
    obs2 = jax.random.normal(k_obs2, (B2, OBS_DIM), jnp.float32)
    a12 = jax.random.normal(k_a12, (B2, ACT_DIM), jnp.float32)
    a22 = jax.random.normal(k_a22, (B2, ACT_DIM), jnp.float32)

    run2 = jax.jit(functools.partial(predictor_forward_pallas, block_rows=64))
    out2 = jax.block_until_ready(run2(obs2, a12, a22, params))
    ref2 = reference_forward(obs2, a12, a22, params)
    assert out2.shape == (B2, OUT_DIM)
    assert jnp.allclose(out2, ref2, atol=2e-2, rtol=2e-2), (
        f"test2 mismatch: max abs diff = {float(jnp.max(jnp.abs(out2 - ref2)))}")

    print("KERNEL_OK")
</pallas_src>

<mosaic_0001>
module attributes {stable_mosaic.version = 11 : i64} {
  func.func @predictor_kernel(%arg0: i32, %arg1: memref<16x44xbf16, #tpu.memory_space<vmem>>, %arg2: memref<44x64xf32, #tpu.memory_space<vmem>>, %arg3: memref<1x64xf32, #tpu.memory_space<vmem>>, %arg4: memref<64x24xf32, #tpu.memory_space<vmem>>, %arg5: memref<1x24xf32, #tpu.memory_space<vmem>>, %arg6: memref<16x24xf32, #tpu.memory_space<vmem>>) attributes {dimension_semantics = [#tpu.dimension_semantics<parallel>], iteration_bounds = array<i64: 1>, scalar_prefetch = 0 : i64, scratch_operands = 0 : i64, tpu.core_type = #tpu.core_type<tc>, window_params = [{transform_indices = @transform_0, window_bounds = array<i64: 16, 44>}, {pipeline_mode = #tpu.pipeline_mode<synchronous>, transform_indices = @transform_1, window_bounds = array<i64: 44, 64>}, {pipeline_mode = #tpu.pipeline_mode<synchronous>, transform_indices = @transform_2, window_bounds = array<i64: 1, 64>}, {pipeline_mode = #tpu.pipeline_mode<synchronous>, transform_indices = @transform_3, window_bounds = array<i64: 64, 24>}, {pipeline_mode = #tpu.pipeline_mode<synchronous>, transform_indices = @transform_4, window_bounds = array<i64: 1, 24>}, {transform_indices = @transform_5, window_bounds = array<i64: 16, 24>}]} {
    %c0 = arith.constant 0 : index
    %c0_0 = arith.constant 0 : index
    %0 = vector.load %arg1[%c0, %c0_0] : memref<16x44xbf16, #tpu.memory_space<vmem>>, vector<16x44xbf16>
    %1 = arith.extf %0 : vector<16x44xbf16> to vector<16x44xf32>
    %c0_1 = arith.constant 0 : index
    %c0_2 = arith.constant 0 : index
    %2 = vector.load %arg2[%c0_1, %c0_2] : memref<44x64xf32, #tpu.memory_space<vmem>>, vector<44x64xf32>
    %cst = arith.constant dense<0.000000e+00> : vector<16x64xf32>
    %3 = tpu.matmul %1, %2, %cst {dimension_numbers = #tpu.dot_dimension_numbers<[1], [0], [0], [1], [0, 0, 1, 1], [], []>} : vector<16x44xf32>, vector<44x64xf32>, vector<16x64xf32> -> vector<16x64xf32>
    %c0_3 = arith.constant 0 : index
    %c0_4 = arith.constant 0 : index
    %4 = vector.load %arg3[%c0_3, %c0_4] : memref<1x64xf32, #tpu.memory_space<vmem>>, vector<1x64xf32>
    %5 = vector.broadcast %4 : vector<1x64xf32> to vector<16x64xf32>
    %6 = arith.addf %3, %5 : vector<16x64xf32>
    %cst_5 = arith.constant 0.000000e+00 : f32
    %7 = vector.broadcast %cst_5 : f32 to vector<16x64xf32>
    %8 = arith.cmpf ogt, %6, %7 : vector<16x64xf32>
    %cst_6 = arith.constant 0.00999999977 : f32
    %9 = vector.broadcast %cst_6 : f32 to vector<16x64xf32>
    %10 = arith.mulf %9, %6 : vector<16x64xf32>
    %11 = arith.select %8, %6, %10 : vector<16x64xi1>, vector<16x64xf32>
    %c0_7 = arith.constant 0 : index
    %c0_8 = arith.constant 0 : index
    %12 = vector.load %arg4[%c0_7, %c0_8] : memref<64x24xf32, #tpu.memory_space<vmem>>, vector<64x24xf32>
    %cst_9 = arith.constant dense<0.000000e+00> : vector<16x24xf32>
    %13 = tpu.matmul %11, %12, %cst_9 {dimension_numbers = #tpu.dot_dimension_numbers<[1], [0], [0], [1], [0, 0, 1, 1], [], []>} : vector<16x64xf32>, vector<64x24xf32>, vector<16x24xf32> -> vector<16x24xf32>
    %c0_10 = arith.constant 0 : index
    %c0_11 = arith.constant 0 : index
    %14 = vector.load %arg5[%c0_10, %c0_11] : memref<1x24xf32, #tpu.memory_space<vmem>>, vector<1x24xf32>
    %15 = vector.broadcast %14 : vector<1x24xf32> to vector<16x24xf32>
    %16 = arith.addf %13, %15 : vector<16x24xf32>
    %c0_12 = arith.constant 0 : index
    %c0_13 = arith.constant 0 : index
    %17 = vector.load %arg6[%c0_12, %c0_13] : memref<16x24xf32, #tpu.memory_space<vmem>>, vector<16x24xf32>
    tpu.vector_store %arg6[%c0_12, %c0_13], %16 {strides = array<i32>} : memref<16x24xf32, #tpu.memory_space<vmem>>, vector<16x24xf32>,
    return
  }
  func.func @transform_0(%arg0: i32) -> (i32, i32) {
    %c0_i32 = arith.constant 0 : i32
    %c0_i32_0 = arith.constant 0 : i32
    return %arg0, %c0_i32 : i32, i32
  }
  func.func @transform_1(%arg0: i32) -> (i32, i32) {
    %c0_i32 = arith.constant 0 : i32
    %c0_i32_0 = arith.constant 0 : i32
    %c0_i32_1 = arith.constant 0 : i32
    return %c0_i32, %c0_i32_0 : i32, i32
  }
  func.func @transform_2(%arg0: i32) -> (i32, i32) {
    %c0_i32 = arith.constant 0 : i32
    %c0_i32_0 = arith.constant 0 : i32
    %c0_i32_1 = arith.constant 0 : i32
    return %c0_i32, %c0_i32_0 : i32, i32
  }
  func.func @transform_3(%arg0: i32) -> (i32, i32) {
    %c0_i32 = arith.constant 0 : i32
    %c0_i32_0 = arith.constant 0 : i32
    %c0_i32_1 = arith.constant 0 : i32
    return %c0_i32, %c0_i32_0 : i32, i32
  }
  func.func @transform_4(%arg0: i32) -> (i32, i32) {
    %c0_i32 = arith.constant 0 : i32
    %c0_i32_0 = arith.constant 0 : i32
    %c0_i32_1 = arith.constant 0 : i32
    return %c0_i32, %c0_i32_0 : i32, i32
  }
  func.func @transform_5(%arg0: i32) -> (i32, i32) {
    %c0_i32 = arith.constant 0 : i32
    %c0_i32_0 = arith.constant 0 : i32
    return %arg0, %c0_i32 : i32, i32
  }
}

</mosaic_0001>

<llo_original>
// kernel: predictor_forward_pallas.1
$region0: #{predictor_forward_pallas.1}
  #allocation0 [shape = 'u32[]', space=smem, size = 0x4, offset = 0x4, fixed_abs, tag = 'smem constant byte address 0x4 - core index']
  #allocation1 [shape = 'u32[144,128]{1,0:T(1,128)}', space=vmem, size = 0x12000, scoped, tag = 'internal scratch']
  %s0 = inlined_call_operand.vmem [shape: bf16[16,44], index: 0, kind: input, shape index: {}]
  %s1 = inlined_call_operand.vmem [shape: f32[44,64], index: 1, kind: input, shape index: {}]
  %s2 = inlined_call_operand.vmem [shape: f32[1,64], index: 2, kind: input, shape index: {}]
  %s3 = inlined_call_operand.vmem [shape: f32[64,24], index: 3, kind: input, shape index: {}]
  %s4 = inlined_call_operand.vmem [shape: f32[1,24], index: 4, kind: input, shape index: {}]
  %s5 = inlined_call_operand.hbm [shape: f32[16,24], index: 5, kind: output, shape index: {}]
  %s6 = sld [smem:[#allocation0]]
  $region30: #{predictor_forward_pallas.1} parent=0
    _
  %s8 = ssub.s32 1, %s6
  %s9 = scalar_select 0, %s8, %s6
  $region1: #{predictor_forward_pallas.1} parent=0
    #allocation2 [shape = 'u8[8192]{0}', space=vmem, size = 0x2000, scoped, tag = 'output window, operand 0, single buffered']
    #allocation3 [shape = 's32[1]{0}', space=sflag, size = 0x4, scoped, tag = 'scoped memory for predictor_forward_pallas.1']
    %10 = vsyncpa [#allocation3], 0
    // Predicated region
    $region2: #{predictor_forward_pallas.1} parent=1 // pred_check
      _
    $region3: #{predictor_forward_pallas.1} parent=1 // pred_check_branch
      %12 = sbr.rel (0) target = $region5
    $region4: #{predictor_forward_pallas.1} parent=1 // pred_region
      _
    $region5: #{predictor_forward_pallas.1} parent=1 // pred_fallthru
      _
    // Predicated region
    $region6: #{predictor_forward_pallas.1} parent=1 // pred_check
      _
    $region7: #{predictor_forward_pallas.1} parent=1 // pred_check_branch
      %14 = sbr.rel (0) target = $region9
    $region8: #{predictor_forward_pallas.1} parent=1 // pred_region
      _
    $region9: #{predictor_forward_pallas.1} parent=1 // pred_fallthru
      _
    // Predicated region
    $region10: #{predictor_forward_pallas.1} parent=1 // pred_check
      _
    $region11: #{predictor_forward_pallas.1} parent=1 // pred_check_branch
      %16 = sbr.rel (0) target = $region13
    $region12: #{predictor_forward_pallas.1} parent=1 // pred_region
      _
    $region13: #{predictor_forward_pallas.1} parent=1 // pred_fallthru
      _
    // Predicated region
    $region14: #{predictor_forward_pallas.1} parent=1 // pred_check
      _
    $region15: #{predictor_forward_pallas.1} parent=1 // pred_check_branch
      %18 = sbr.rel (0) target = $region17
    $region16: #{predictor_forward_pallas.1} parent=1 // pred_region
      _
    $region17: #{predictor_forward_pallas.1} parent=1 // pred_fallthru
      _
    // Predicated region
    $region18: #{predictor_forward_pallas.1} parent=1 // pred_check
      _
    $region19: #{predictor_forward_pallas.1} parent=1 // pred_check_branch
      %20 = sbr.rel (0) target = $region21
    $region20: #{predictor_forward_pallas.1} parent=1 // pred_region
      _
    $region21: #{predictor_forward_pallas.1} parent=1 // pred_fallthru
      _
    %v21 = vld [vmem:[%s0] sm:$0xf]
    %v22 = vld [vmem:[%s0 + $0x4] sm:$0xf]
    %v23 = vunpack.c.l.bf16 %v21
    %v24 = vunpack.c.l.bf16 %v22
    %v25 = vld [vmem:[%s1] sm:$0xff]
    %v26 = vld [vmem:[%s1 + $0x8] sm:$0xff]
    %v27 = vld [vmem:[%s1 + $0x10] sm:$0xff]
    %v28 = vld [vmem:[%s1 + $0x18] sm:$0xff]
    %v29 = vld [vmem:[%s1 + $0x20] sm:$0xff]
    %v30 = vld [vmem:[%s1 + $0x28] sm:$0xf]
    %v31 = vld [vmem:[%s2] sm:$0x1]
    %v33 = vlaneseq
    %v34 = vshrl.u32 %v33, 7
    %v35 = vsub.s32 0, %v34
    %v36 = vrot.slane %v31, %v35
    %vm38 = vcmask 359424
    %v40 = vsel %vm38, %v23, 0
    %v43 = vsel %vm38, %v24, 0
    %vm45 = vcmask 1043456
    %v47 = vsel %vm45, %v30, 0
    %49 = vmatprep.subr.mxu0 0.0
    %50 = vmatpush1.msra.mxu0 %v25
    %51 = vmatprep.subr.mxu0 0.0
    %52 = vmatpush1.msra.mxu0 %v26
    %53 = vmatprep.subr.mxu0 0.0
    %54 = vmatpush1.msra.mxu0 %v27
    %55 = vmatprep.subr.mxu0 0.0
    %56 = vmatpush1.msra.mxu0 %v28
    %57 = vmatprep.subr.mxu0 0.0
    %58 = vmatpush1.msra.mxu0 %v29
    %59 = vmatprep.subr.mxu0 0.0
    %60 = vmatpush1.msra.mxu0 %v47
    %61 = vmatprep.subr.mxu0 0.0
    %62 = vmatpush1.msra.mxu0 0.0
    %63 = vmatprep.subr.mxu0 0.0
    %64 = vmatpush1.msra.mxu0 0.0
    %65 = vmatprep.subr.mxu0 0.0
    %66 = vmatpush1.msra.mxu0 0.0
    %67 = vmatprep.subr.mxu0 0.0
    %68 = vmatpush1.msra.mxu0 0.0
    %69 = vmatprep.subr.mxu0 0.0
    %70 = vmatpush1.msra.mxu0 0.0
    %71 = vmatprep.subr.mxu0 0.0
    %72 = vmatpush1.msra.mxu0 0.0
    %73 = vmatprep.subr.mxu0 0.0
    %74 = vmatpush1.msra.mxu0 0.0
    %75 = vmatprep.subr.mxu0 0.0
    %76 = vmatpush1.msra.mxu0 0.0
    %77 = vmatprep.subr.mxu0 0.0
    %78 = vmatpush1.msra.mxu0 0.0
    %79 = vmatprep.subr.mxu0 0.0
    %80 = vmatpush1.msra.mxu0 0.0
    %81 = vmatprep.subr.mxu0 0.0
    %82 = vmatpush1.msra.mxu0 0.0
    %83 = vmatprep.subr.mxu0 0.0
    %84 = vmatpush1.msra.mxu0 0.0
    %85 = vmatprep.subr.mxu0 0.0
    %86 = vmatpush1.msra.mxu0 0.0
    %87 = vmatprep.subr.mxu0 0.0
    %88 = vmatpush1.msra.mxu0 0.0
    %89 = vmatprep.subr.mxu0 0.0
    %90 = vmatpush1.msra.mxu0 0.0
    %91 = vmatprep.subr.mxu0 0.0
    %92 = vmatpush1.msra.mxu0 0.0
    %93 = vmatprep.subr.mxu0 0.0
    %94 = vmatpush1.msra.mxu0 0.0
    %95 = vmatprep.subr.mxu0 0.0
    %96 = vmatpush1.msra.mxu0 0.0
    %97 = vmatprep.subr.mxu0 0.0
    %98 = vmatpush1.msra.mxu0 0.0
    %99 = vmatprep.subr.mxu0 0.0
    %100 = vmatpush1.msra.mxu0 0.0
    %101 = vmatprep.subr.mxu0 0.0
    %102 = vmatpush1.msra.mxu0 0.0
    %103 = vmatprep.subr.mxu0 0.0
    %104 = vmatpush1.msra.mxu0 0.0
    %105 = vmatprep.subr.mxu0 0.0
    %106 = vmatpush1.msra.mxu0 0.0
    %107 = vmatprep.subr.mxu0 0.0
    %108 = vmatpush1.msra.mxu0 0.0
    %109 = vmatprep.subr.mxu0 0.0
    %110 = vmatpush1.msra.mxu0 0.0
    %111 = vmatprep.subr.mxu0 0.0
    %112 = vmatpush1.msra.mxu0 0.0
    %113 = vmatprep.mubr.f32.mxu0 0.0
    %114 = vmatmul.mubr.f32.gmra.mrb[0].mxu0 %v40
    %v115 = vpop.f32.mrb[0].mxu0
    %v116 = vadd.f32 %v36, %v115
    %v117 = vpop.f32.mrb[0].mxu0
    %118 = vmatprep.mubr.f32.mxu0 0.0
    %119 = vmatmul.mubr.f32.gmra.mrb[0].mxu0 %v43
    %v120 = vpop.f32.mrb[0].mxu0
    %v121 = vadd.f32 %v36, %v120
    %v122 = vpop.f32.mrb[0].mxu0
    %123 = vdwg.mxu0
    %vm124 = vcmp.gt.f32.partialorder %v116, 0.0
    %vm125 = vcmp.gt.f32.partialorder %v121, 0.0
    %v126 = vmul.f32 %v116, 0.01
    %v127 = vmul.f32 %v121, 0.01
    %v128 = vsel %vm124, %v116, %v126
    %v129 = vsel %vm125, %v121, %v127
    %v130 = vld [vmem:[%s3] sm:$0xff]
    %v131 = vld [vmem:[%s3 + $0x8] sm:$0xff]
    %v132 = vld [vmem:[%s3 + $0x10] sm:$0xff]
    %v133 = vld [vmem:[%s3 + $0x18] sm:$0xff]
    %v134 = vld [vmem:[%s3 + $0x20] sm:$0xff]
    %v135 = vld [vmem:[%s3 + $0x28] sm:$0xff]
    %v136 = vld [vmem:[%s3 + $0x30] sm:$0xff]
    %v137 = vld [vmem:[%s3 + $0x38] sm:$0xff]
    %v138 = vld [vmem:[%s4] sm:$0x1]
    %v140 = vlaneseq
    %v141 = vshrl.u32 %v140, 7
    %v142 = vsub.s32 0, %v141
    %v143 = vrot.slane %v138, %v142
    %vm145 = vcmask 523264
    %v147 = vsel %vm145, %v128, 0
    %v150 = vsel %vm145, %v129, 0
    %152 = vmatprep.subr.mxu0 0.0
    %153 = vmatpush1.msra.mxu0 %v130
    %154 = vmatprep.subr.mxu0 0.0
    %155 = vmatpush1.msra.mxu0 %v131
    %156 = vmatprep.subr.mxu0 0.0
    %157 = vmatpush1.msra.mxu0 %v132
    %158 = vmatprep.subr.mxu0 0.0
    %159 = vmatpush1.msra.mxu0 %v133
    %160 = vmatprep.subr.mxu0 0.0
    %161 = vmatpush1.msra.mxu0 %v134
    %162 = vmatprep.subr.mxu0 0.0
    %163 = vmatpush1.msra.mxu0 %v135
    %164 = vmatprep.subr.mxu0 0.0
    %165 = vmatpush1.msra.mxu0 %v136
    %166 = vmatprep.subr.mxu0 0.0
    %167 = vmatpush1.msra.mxu0 %v137
    %168 = vmatprep.subr.mxu0 0.0
    %169 = vmatpush1.msra.mxu0 0.0
    %170 = vmatprep.subr.mxu0 0.0
    %171 = vmatpush1.msra.mxu0 0.0
    %172 = vmatprep.subr.mxu0 0.0
    %173 = vmatpush1.msra.mxu0 0.0
    %174 = vmatprep.subr.mxu0 0.0
    %175 = vmatpush1.msra.mxu0 0.0
    %176 = vmatprep.subr.mxu0 0.0
    %177 = vmatpush1.msra.mxu0 0.0
    %178 = vmatprep.subr.mxu0 0.0
    %179 = vmatpush1.msra.mxu0 0.0
    %180 = vmatprep.subr.mxu0 0.0
    %181 = vmatpush1.msra.mxu0 0.0
    %182 = vmatprep.subr.mxu0 0.0
    %183 = vmatpush1.msra.mxu0 0.0
    %184 = vmatprep.subr.mxu0 0.0
    %185 = vmatpush1.msra.mxu0 0.0
    %186 = vmatprep.subr.mxu0 0.0
    %187 = vmatpush1.msra.mxu0 0.0
    %188 = vmatprep.subr.mxu0 0.0
    %189 = vmatpush1.msra.mxu0 0.0
    %190 = vmatprep.subr.mxu0 0.0
    %191 = vmatpush1.msra.mxu0 0.0
    %192 = vmatprep.subr.mxu0 0.0
    %193 = vmatpush1.msra.mxu0 0.0
    %194 = vmatprep.subr.mxu0 0.0
    %195 = vmatpush1.msra.mxu0 0.0
    %196 = vmatprep.subr.mxu0 0.0
    %197 = vmatpush1.msra.mxu0 0.0
    %198 = vmatprep.subr.mxu0 0.0
    %199 = vmatpush1.msra.mxu0 0.0
    %200 = vmatprep.subr.mxu0 0.0
    %201 = vmatpush1.msra.mxu0 0.0
    %202 = vmatprep.subr.mxu0 0.0
    %203 = vmatpush1.msra.mxu0 0.0
    %204 = vmatprep.subr.mxu0 0.0
    %205 = vmatpush1.msra.mxu0 0.0
    %206 = vmatprep.subr.mxu0 0.0
    %207 = vmatpush1.msra.mxu0 0.0
    %208 = vmatprep.subr.mxu0 0.0
    %209 = vmatpush1.msra.mxu0 0.0
    %210 = vmatprep.subr.mxu0 0.0
    %211 = vmatpush1.msra.mxu0 0.0
    %212 = vmatprep.subr.mxu0 0.0
    %213 = vmatpush1.msra.mxu0 0.0
    %214 = vmatprep.subr.mxu0 0.0
    %215 = vmatpush1.msra.mxu0 0.0
    %216 = vmatprep.mubr.f32.mxu0 0.0
    %217 = vmatmul.mubr.f32.gmra.mrb[0].mxu0 %v147
    %v218 = vpop.f32.mrb[0].mxu0
    %v219 = vadd.f32 %v143, %v218
    %v220 = vpop.f32.mrb[0].mxu0
    %221 = vmatprep.mubr.f32.mxu0 0.0
    %222 = vmatmul.mubr.f32.gmra.mrb[0].mxu0 %v150
    %v223 = vpop.f32.mrb[0].mxu0
    %v224 = vadd.f32 %v143, %v223
    %v225 = vpop.f32.mrb[0].mxu0
    %226 = vdwg.mxu0
    %vm227 = vcmask 195584
    %228 = vst.msk [vmem:[#allocation2] sm:$0xff] %vm227, %v219
    %229 = vst.msk [vmem:[#allocation2 + $0x8] sm:$0xff] %vm227, %v224
    // Predicated region
    $region22: #{predictor_forward_pallas.1} parent=1 // pred_check
      _
    $region23: #{predictor_forward_pallas.1} parent=1 // pred_check_branch
      %231 = sbr.rel (0) target = $region25
    $region24: #{predictor_forward_pallas.1} parent=1 // pred_region
      %s233 = ssub.s32 256, 256
      %234 = vsyncadd [#allocation3], %s233
      %s235 = sshll.u32 [#allocation2], 4
      %s236 = int_to_ptr.vmem [resolvable:$true] %s235
      %241 = dma.vmem_to_hbm [thread:$0]  %s236, 256, %s5, [#allocation3], 128, 128, 8
    $region25: #{predictor_forward_pallas.1} parent=1 // pred_fallthru
      _
    // Predicated region
    $region26: #{predictor_forward_pallas.1} parent=1 // pred_check
      _
    $region27: #{predictor_forward_pallas.1} parent=1 // pred_check_branch
      %243 = sbr.rel (0) target = $region29
    $region28: #{predictor_forward_pallas.1} parent=1 // pred_region
      %244 = dma.done [#allocation3], 256
    $region29: #{predictor_forward_pallas.1} parent=1 // pred_fallthru
      _
    %245 = vsyncpa [#allocation3], 1

</llo_original>
